<compile_context>
chip_gen: v7x
topology: tpu7x:2x2x1
jax: 0.10.0
libtpu: 0.0.40
codegen_flags: <defaults>
</compile_context>

<pallas_src>
import functools

import jax
import jax.numpy as jnp
from jax import lax
from jax.experimental import pallas as pl
from jax.experimental.pallas import tpu as pltpu

LN_EPS = 1e-5  # PyTorch nn.LayerNorm default


def _patchlize_kernel(x_ref, w_ref, b_ref, g_ref, beta_ref, o_ref):
    # x_ref: (TM, K) compute dtype; w_ref: (K, H) compute dtype
    # b/g/beta: (1, H) f32; o_ref: (TM, H) f32
    # Linear: y = x @ W + b  (MXU matmul, f32 accumulate)
    y = jnp.dot(x_ref[...], w_ref[...], preferred_element_type=jnp.float32)
    y = y + b_ref[...]

    # LayerNorm over hidden dim, biased variance (PyTorch semantics), f32.
    mean = jnp.mean(y, axis=-1, keepdims=True)
    centered = y - mean
    var = jnp.mean(centered * centered, axis=-1, keepdims=True)
    inv = lax.rsqrt(var + LN_EPS)

    o_ref[...] = (centered * inv * g_ref[...] + beta_ref[...]).astype(o_ref.dtype)


def _round_up(a, m):
    return (a + m - 1) // m * m


@functools.partial(jax.jit, static_argnames=("patch_size", "tm", "compute_dtype"))
def patchlize_forward(x, weight, bias, gamma, beta, patch_size, *,
                      tm=512, compute_dtype=jnp.bfloat16):
    """x: (B, C, H, W) NCHW float32. weight: (K, h_dim). Returns (B, L, h_dim) f32."""
    B, C, H, W = x.shape
    p = patch_size
    assert H % p == 0 and W % p == 0
    nh, nw = H // p, W // p
    L = nh * nw
    K = C * p * p
    h_dim = weight.shape[1]
    M = B * L

    # --- Unfold + Transpose(1,2): pure data movement in the wrapper ---
    # (B, C, nh, p, nw, p) -> (B, nh, nw, C, p, p) -> (B*L, C*p*p)
    patches = x.reshape(B, C, nh, p, nw, p)
    patches = jnp.transpose(patches, (0, 2, 4, 1, 3, 5))
    patches = patches.reshape(M, K).astype(compute_dtype)

    w = weight.astype(compute_dtype)
    b2 = bias.reshape(1, h_dim).astype(jnp.float32)
    g2 = gamma.reshape(1, h_dim).astype(jnp.float32)
    be2 = beta.reshape(1, h_dim).astype(jnp.float32)

    # --- M tiling (rows are independent; LN reduces only over h_dim) ---
    row_align = 16 if compute_dtype == jnp.bfloat16 else 8
    TM = min(tm, _round_up(M, row_align))       # TM is a multiple of row_align
    M_pad = _round_up(M, TM)
    if M_pad != M:
        patches = jnp.pad(patches, ((0, M_pad - M), (0, 0)))

    grid = (M_pad // TM,)

    itemsize = jnp.dtype(compute_dtype).itemsize
    cost = pl.CostEstimate(
        flops=2 * M_pad * K * h_dim,
        transcendentals=M_pad,  # one rsqrt per row
        bytes_accessed=M_pad * K * itemsize + K * h_dim * itemsize
        + M_pad * h_dim * 4 + 3 * h_dim * 4,
    )

    out = pl.pallas_call(
        _patchlize_kernel,
        out_shape=jax.ShapeDtypeStruct((M_pad, h_dim), jnp.float32),
        grid_spec=pltpu.PrefetchScalarGridSpec(
            num_scalar_prefetch=0,
            grid=grid,
            in_specs=[
                pl.BlockSpec((TM, K), lambda i: (i, 0)),       # patches: streamed
                pl.BlockSpec((K, h_dim), lambda i: (0, 0)),    # weight: resident
                pl.BlockSpec((1, h_dim), lambda i: (0, 0)),    # bias
                pl.BlockSpec((1, h_dim), lambda i: (0, 0)),    # gamma
                pl.BlockSpec((1, h_dim), lambda i: (0, 0)),    # beta
            ],
            out_specs=pl.BlockSpec((TM, h_dim), lambda i: (i, 0)),
        ),
        compiler_params=pltpu.CompilerParams(
            dimension_semantics=("parallel",),
        ),
        cost_estimate=cost,
    )(patches, w, b2, g2, be2)

    return out[:M].reshape(B, L, h_dim)


def make_params(key, n_channel, patch_size, h_dim):
    """Deterministic param init matching the shapes in Patchlize.__init__."""
    K = n_channel * patch_size * patch_size
    kw, kb = jax.random.split(key)
    bound = 1.0 / jnp.sqrt(K)
    # Linear weight stored as (in, out) so the kernel does x @ W directly
    weight = jax.random.uniform(kw, (K, h_dim), jnp.float32, -bound, bound)
    bias = jax.random.uniform(kb, (h_dim,), jnp.float32, -bound, bound)
    gamma = jnp.ones((h_dim,), jnp.float32)   # LayerNorm weight
    beta = jnp.zeros((h_dim,), jnp.float32)   # LayerNorm bias
    return weight, bias, gamma, beta


if __name__ == "__main__":
    # Small shapes consistent with the module: B=2, C=4, H=W=16, patch=4 -> L=16
    B, C, H, W = 2, 4, 16, 16
    patch_size = 4
    h_dim = 32

    key = jax.random.PRNGKey(0)
    kx, kp = jax.random.split(key)
    x = jax.random.normal(kx, (B, C, H, W), jnp.float32)
    weight, bias, gamma, beta = make_params(kp, C, patch_size, h_dim)

    out = patchlize_forward(x, weight, bias, gamma, beta, patch_size)
    out = jax.block_until_ready(out)

    # ---- Pure-JAX references (same semantics as the PyTorch module) ----
    nh, nw = H // patch_size, W // patch_size
    L = nh * nw
    patches = x.reshape(B, C, nh, patch_size, nw, patch_size)
    patches = jnp.transpose(patches, (0, 2, 4, 1, 3, 5)).reshape(B, L, -1)

    def ln_ref(y):
        mu = y.mean(-1, keepdims=True)
        var = ((y - mu) ** 2).mean(-1, keepdims=True)
        return (y - mu) / jnp.sqrt(var + LN_EPS) * gamma + beta

    # Exact-path reference: same bf16 cast of the matmul operands as the kernel,
    # f32 accumulation -> should match the kernel to float rounding noise.
    p_bf = patches.astype(jnp.bfloat16).astype(jnp.float32)
    w_bf = weight.astype(jnp.bfloat16).astype(jnp.float32)
    ref_exact = ln_ref(jnp.einsum("blk,kh->blh", p_bf, w_bf) + bias)

    # Full-f32 module reference: loose check on bf16 MXU-operand precision.
    ref_f32 = ln_ref(patches @ weight + bias)

    assert out.shape == (B, L, h_dim)
    assert jnp.allclose(out, ref_exact, atol=1e-4, rtol=1e-4), "kernel mismatch"
    assert jnp.allclose(out, ref_f32, atol=5e-2, rtol=5e-2), "bf16 drift too large"
    print("KERNEL_OK")
</pallas_src>

<mosaic_0001>
module attributes {stable_mosaic.version = 11 : i64} {
  func.func @_patchlize_kernel(%arg0: i32, %arg1: memref<32x64xbf16, #tpu.memory_space<vmem>>, %arg2: memref<64x32xbf16, #tpu.memory_space<vmem>>, %arg3: memref<1x32xf32, #tpu.memory_space<vmem>>, %arg4: memref<1x32xf32, #tpu.memory_space<vmem>>, %arg5: memref<1x32xf32, #tpu.memory_space<vmem>>, %arg6: memref<32x32xf32, #tpu.memory_space<vmem>>) attributes {dimension_semantics = [#tpu.dimension_semantics<parallel>], iteration_bounds = array<i64: 1>, scalar_prefetch = 0 : i64, scratch_operands = 0 : i64, tpu.core_type = #tpu.core_type<tc>, window_params = [{transform_indices = @transform_0, window_bounds = array<i64: 32, 64>}, {pipeline_mode = #tpu.pipeline_mode<synchronous>, transform_indices = @transform_1, window_bounds = array<i64: 64, 32>}, {pipeline_mode = #tpu.pipeline_mode<synchronous>, transform_indices = @transform_2, window_bounds = array<i64: 1, 32>}, {pipeline_mode = #tpu.pipeline_mode<synchronous>, transform_indices = @transform_3, window_bounds = array<i64: 1, 32>}, {pipeline_mode = #tpu.pipeline_mode<synchronous>, transform_indices = @transform_4, window_bounds = array<i64: 1, 32>}, {transform_indices = @transform_5, window_bounds = array<i64: 32, 32>}]} {
    %c0 = arith.constant 0 : index
    %c0_0 = arith.constant 0 : index
    %0 = vector.load %arg1[%c0, %c0_0] : memref<32x64xbf16, #tpu.memory_space<vmem>>, vector<32x64xbf16>
    %c0_1 = arith.constant 0 : index
    %c0_2 = arith.constant 0 : index
    %1 = vector.load %arg2[%c0_1, %c0_2] : memref<64x32xbf16, #tpu.memory_space<vmem>>, vector<64x32xbf16>
    %cst = arith.constant dense<0.000000e+00> : vector<32x32xf32>
    %2 = tpu.matmul %0, %1, %cst {dimension_numbers = #tpu.dot_dimension_numbers<[1], [0], [0], [1], [0, 0, 1, 1], [], []>} : vector<32x64xbf16>, vector<64x32xbf16>, vector<32x32xf32> -> vector<32x32xf32>
    %c0_3 = arith.constant 0 : index
    %c0_4 = arith.constant 0 : index
    %3 = vector.load %arg3[%c0_3, %c0_4] : memref<1x32xf32, #tpu.memory_space<vmem>>, vector<1x32xf32>
    %4 = vector.broadcast %3 : vector<1x32xf32> to vector<32x32xf32>
    %5 = arith.addf %2, %4 : vector<32x32xf32>
    %cst_5 = arith.constant dense<0.000000e+00> : vector<32xf32>
    %6 = vector.multi_reduction <add>, %5, %cst_5 [1] : vector<32x32xf32> to vector<32xf32>
    %7 = vector.shape_cast %6 : vector<32xf32> to vector<32x1xf32>
    %cst_6 = arith.constant 3.200000e+01 : f32
    %8 = vector.broadcast %cst_6 : f32 to vector<32x1xf32>
    %9 = arith.divf %7, %8 : vector<32x1xf32>
    %10 = vector.broadcast %9 : vector<32x1xf32> to vector<32x32xf32>
    %11 = arith.subf %5, %10 : vector<32x32xf32>
    %12 = arith.mulf %11, %11 : vector<32x32xf32>
    %cst_7 = arith.constant dense<0.000000e+00> : vector<32xf32>
    %13 = vector.multi_reduction <add>, %12, %cst_7 [1] : vector<32x32xf32> to vector<32xf32>
    %14 = vector.shape_cast %13 : vector<32xf32> to vector<32x1xf32>
    %cst_8 = arith.constant 3.200000e+01 : f32
    %15 = vector.broadcast %cst_8 : f32 to vector<32x1xf32>
    %16 = arith.divf %14, %15 : vector<32x1xf32>
    %cst_9 = arith.constant 9.99999974E-6 : f32
    %17 = vector.broadcast %cst_9 : f32 to vector<32x1xf32>
    %18 = arith.addf %16, %17 : vector<32x1xf32>
    %19 = math.rsqrt %18 : vector<32x1xf32>
    %20 = vector.broadcast %19 : vector<32x1xf32> to vector<32x32xf32>
    %21 = arith.mulf %11, %20 : vector<32x32xf32>
    %c0_10 = arith.constant 0 : index
    %c0_11 = arith.constant 0 : index
    %22 = vector.load %arg4[%c0_10, %c0_11] : memref<1x32xf32, #tpu.memory_space<vmem>>, vector<1x32xf32>
    %23 = vector.broadcast %22 : vector<1x32xf32> to vector<32x32xf32>
    %24 = arith.mulf %21, %23 : vector<32x32xf32>
    %c0_12 = arith.constant 0 : index
    %c0_13 = arith.constant 0 : index
    %25 = vector.load %arg5[%c0_12, %c0_13] : memref<1x32xf32, #tpu.memory_space<vmem>>, vector<1x32xf32>
    %26 = vector.broadcast %25 : vector<1x32xf32> to vector<32x32xf32>
    %27 = arith.addf %24, %26 : vector<32x32xf32>
    %c0_14 = arith.constant 0 : index
    %c0_15 = arith.constant 0 : index
    %28 = vector.load %arg6[%c0_14, %c0_15] : memref<32x32xf32, #tpu.memory_space<vmem>>, vector<32x32xf32>
    tpu.vector_store %arg6[%c0_14, %c0_15], %27 {strides = array<i32>} : memref<32x32xf32, #tpu.memory_space<vmem>>, vector<32x32xf32>,
    return
  }
  func.func @transform_0(%arg0: i32) -> (i32, i32) {
    %c0_i32 = arith.constant 0 : i32
    %c0_i32_0 = arith.constant 0 : i32
    return %arg0, %c0_i32 : i32, i32
  }
  func.func @transform_1(%arg0: i32) -> (i32, i32) {
    %c0_i32 = arith.constant 0 : i32
    %c0_i32_0 = arith.constant 0 : i32
    %c0_i32_1 = arith.constant 0 : i32
    return %c0_i32, %c0_i32_0 : i32, i32
  }
  func.func @transform_2(%arg0: i32) -> (i32, i32) {
    %c0_i32 = arith.constant 0 : i32
    %c0_i32_0 = arith.constant 0 : i32
    %c0_i32_1 = arith.constant 0 : i32
    return %c0_i32, %c0_i32_0 : i32, i32
  }
  func.func @transform_3(%arg0: i32) -> (i32, i32) {
    %c0_i32 = arith.constant 0 : i32
    %c0_i32_0 = arith.constant 0 : i32
    %c0_i32_1 = arith.constant 0 : i32
    return %c0_i32, %c0_i32_0 : i32, i32
  }
  func.func @transform_4(%arg0: i32) -> (i32, i32) {
    %c0_i32 = arith.constant 0 : i32
    %c0_i32_0 = arith.constant 0 : i32
    %c0_i32_1 = arith.constant 0 : i32
    return %c0_i32, %c0_i32_0 : i32, i32
  }
  func.func @transform_5(%arg0: i32) -> (i32, i32) {
    %c0_i32 = arith.constant 0 : i32
    %c0_i32_0 = arith.constant 0 : i32
    return %arg0, %c0_i32 : i32, i32
  }
}

</mosaic_0001>

<llo_original>
// kernel: patchlize_forward.1
$region0: #{patchlize_forward.1}
  #allocation0 [shape = 'u32[]', space=smem, size = 0x4, offset = 0x4, fixed_abs, tag = 'smem constant byte address 0x4 - core index']
  #allocation1 [shape = 'u32[144,128]{1,0:T(1,128)}', space=vmem, size = 0x12000, scoped, tag = 'internal scratch']
  %s0 = inlined_call_operand.vmem [shape: bf16[32,64], index: 0, kind: input, shape index: {}]
  %s1 = inlined_call_operand.vmem [shape: bf16[64,32], index: 1, kind: input, shape index: {}]
  %s2 = inlined_call_operand.vmem [shape: f32[1,32], index: 2, kind: input, shape index: {}]
  %s3 = inlined_call_operand.vmem [shape: f32[1,32], index: 3, kind: input, shape index: {}]
  %s4 = inlined_call_operand.vmem [shape: f32[1,32], index: 4, kind: input, shape index: {}]
  %s5 = inlined_call_operand.hbm [shape: f32[32,32], index: 5, kind: output, shape index: {}]
  %s6 = sld [smem:[#allocation0]]
  $region30: #{patchlize_forward.1} parent=0
    _
  %s8 = ssub.s32 1, %s6
  %s9 = scalar_select 0, %s8, %s6
  $region1: #{patchlize_forward.1} parent=0
    #allocation2 [shape = 'u8[16384]{0}', space=vmem, size = 0x4000, scoped, tag = 'output window, operand 0, single buffered']
    #allocation3 [shape = 's32[1]{0}', space=sflag, size = 0x4, scoped, tag = 'scoped memory for patchlize_forward.1']
    %10 = vsyncpa [#allocation3], 0
    // Predicated region
    $region2: #{patchlize_forward.1} parent=1 // pred_check
      _
    $region3: #{patchlize_forward.1} parent=1 // pred_check_branch
      %12 = sbr.rel (0) target = $region5
    $region4: #{patchlize_forward.1} parent=1 // pred_region
      _
    $region5: #{patchlize_forward.1} parent=1 // pred_fallthru
      _
    // Predicated region
    $region6: #{patchlize_forward.1} parent=1 // pred_check
      _
    $region7: #{patchlize_forward.1} parent=1 // pred_check_branch
      %14 = sbr.rel (0) target = $region9
    $region8: #{patchlize_forward.1} parent=1 // pred_region
      _
    $region9: #{patchlize_forward.1} parent=1 // pred_fallthru
      _
    // Predicated region
    $region10: #{patchlize_forward.1} parent=1 // pred_check
      _
    $region11: #{patchlize_forward.1} parent=1 // pred_check_branch
      %16 = sbr.rel (0) target = $region13
    $region12: #{patchlize_forward.1} parent=1 // pred_region
      _
    $region13: #{patchlize_forward.1} parent=1 // pred_fallthru
      _
    // Predicated region
    $region14: #{patchlize_forward.1} parent=1 // pred_check
      _
    $region15: #{patchlize_forward.1} parent=1 // pred_check_branch
      %18 = sbr.rel (0) target = $region17
    $region16: #{patchlize_forward.1} parent=1 // pred_region
      _
    $region17: #{patchlize_forward.1} parent=1 // pred_fallthru
      _
    // Predicated region
    $region18: #{patchlize_forward.1} parent=1 // pred_check
      _
    $region19: #{patchlize_forward.1} parent=1 // pred_check_branch
      %20 = sbr.rel (0) target = $region21
    $region20: #{patchlize_forward.1} parent=1 // pred_region
      _
    $region21: #{patchlize_forward.1} parent=1 // pred_fallthru
      _
    %v22 = vld [vmem:[%s0] sm:$0xf]
    %v23 = vld [vmem:[%s0 + $0x4] sm:$0xf]
    %v24 = vld [vmem:[%s0 + $0x8] sm:$0xf]
    %v25 = vld [vmem:[%s0 + $0xc] sm:$0xf]
    %v26 = vld [vmem:[%s1] sm:$0xf]
    %v27 = vld [vmem:[%s1 + $0x4] sm:$0xf]
    %v28 = vld [vmem:[%s1 + $0x8] sm:$0xf]
    %v29 = vld [vmem:[%s1 + $0xc] sm:$0xf]
    %v30 = vld [vmem:[%s1 + $0x10] sm:$0xf]
    %v31 = vld [vmem:[%s1 + $0x14] sm:$0xf]
    %v32 = vld [vmem:[%s1 + $0x18] sm:$0xf]
    %v33 = vld [vmem:[%s1 + $0x1c] sm:$0xf]
    %v34 = vld [vmem:[%s2] sm:$0x1]
    %v36 = vlaneseq
    %v37 = vshrl.u32 %v36, 7
    %v38 = vsub.s32 0, %v37
    %v39 = vrot.slane %v34, %v38
    %v45 = vunpack.c.l.b16 %v22
    %v46 = vunpack.c.l.b16 %v23
    %v47 = vunpack.c.l.b16 %v24
    %v48 = vunpack.c.l.b16 %v25
    %v49 = vpack.c.b16 %v46, %v45
    %v50 = vpack.c.b16 %v48, %v47
    %v59 = vunpack.c.l.b16 %v26
    %v60 = vunpack.c.l.b16 %v27
    %v61 = vunpack.c.l.b16 %v28
    %v62 = vunpack.c.l.b16 %v29
    %v63 = vunpack.c.l.b16 %v30
    %v64 = vunpack.c.l.b16 %v31
    %v65 = vunpack.c.l.b16 %v32
    %v66 = vunpack.c.l.b16 %v33
    %v67 = vpack.c.b16 %v60, %v59
    %v68 = vpack.c.b16 %v62, %v61
    %v69 = vpack.c.b16 %v64, %v63
    %v70 = vpack.c.b16 %v66, %v65
    %vm75 = vcmask 523264
    %v77 = vsel %vm75, %v49, 0
    %v80 = vsel %vm75, %v50, 0
    %82 = vmatprep.subr.bf16.mxu0 0
    %83 = vmatpush1.bf16.msra.mxu0 %v67
    %84 = vmatprep.subr.bf16.mxu0 0
    %85 = vmatpush1.bf16.msra.mxu0 %v68
    %86 = vmatprep.subr.bf16.mxu0 0
    %87 = vmatpush1.bf16.msra.mxu0 %v69
    %88 = vmatprep.subr.bf16.mxu0 0
    %89 = vmatpush1.bf16.msra.mxu0 %v70
    %90 = vmatprep.subr.bf16.mxu0 0
    %91 = vmatpush1.bf16.msra.mxu0 0
    %92 = vmatprep.subr.bf16.mxu0 0
    %93 = vmatpush1.bf16.msra.mxu0 0
    %94 = vmatprep.subr.bf16.mxu0 0
    %95 = vmatpush1.bf16.msra.mxu0 0
    %96 = vmatprep.subr.bf16.mxu0 0
    %97 = vmatpush1.bf16.msra.mxu0 0
    %98 = vmatprep.subr.bf16.mxu0 0
    %99 = vmatpush1.bf16.msra.mxu0 0
    %100 = vmatprep.subr.bf16.mxu0 0
    %101 = vmatpush1.bf16.msra.mxu0 0
    %102 = vmatprep.subr.bf16.mxu0 0
    %103 = vmatpush1.bf16.msra.mxu0 0
    %104 = vmatprep.subr.bf16.mxu0 0
    %105 = vmatpush1.bf16.msra.mxu0 0
    %106 = vmatprep.subr.bf16.mxu0 0
    %107 = vmatpush1.bf16.msra.mxu0 0
    %108 = vmatprep.subr.bf16.mxu0 0
    %109 = vmatpush1.bf16.msra.mxu0 0
    %110 = vmatprep.subr.bf16.mxu0 0
    %111 = vmatpush1.bf16.msra.mxu0 0
    %112 = vmatprep.subr.bf16.mxu0 0
    %113 = vmatpush1.bf16.msra.mxu0 0
    %114 = vmatprep.mubr.bf16.mxu0 0
    %115 = vmatmul.mubr.bf16.gmra.mrb[0].mxu0 %v77
    %v116 = vpop.f32.mrb[0].mxu0
    %v117 = vadd.f32 %v39, %v116
    %v118 = vpop.f32.mrb[0].mxu0
    %v119 = vpop.f32.mrb[0].mxu0
    %v120 = vadd.f32 %v39, %v119
    %v121 = vpop.f32.mrb[0].mxu0
    %122 = vmatprep.mubr.bf16.mxu0 0
    %123 = vmatmul.mubr.bf16.gmra.mrb[0].mxu0 %v80
    %v124 = vpop.f32.mrb[0].mxu0
    %v125 = vadd.f32 %v39, %v124
    %v126 = vpop.f32.mrb[0].mxu0
    %v127 = vpop.f32.mrb[0].mxu0
    %v128 = vadd.f32 %v39, %v127
    %v129 = vpop.f32.mrb[0].mxu0
    %130 = vdwg.mxu0
    %vm131 = vcmask 261120
    %v132 = vsel %vm131, %v117, 0.0
    %133 = vadd.xlane.f32.xlu0 %v132
    %v134 = vpop.xlane.xlu0 %133
    %v135 = vsel %vm131, %v120, 0.0
    %136 = vadd.xlane.f32.xlu0 %v135
    %v137 = vpop.xlane.xlu0 %136
    %v138 = vsel %vm131, %v125, 0.0
    %139 = vadd.xlane.f32.xlu0 %v138
    %v140 = vpop.xlane.xlu0 %139
    %v141 = vsel %vm131, %v128, 0.0
    %142 = vadd.xlane.f32.xlu0 %v141
    %v143 = vpop.xlane.xlu0 %142
    %v144 = vrcp.pop 32.0
    %v145 = vmul.f32 %v134, %v144
    %v146 = vmul.f32 %v137, %v144
    %v147 = vmul.f32 %v140, %v144
    %v148 = vmul.f32 %v143, %v144
    %v149 = vsub.f32 %v117, %v145
    %v150 = vsub.f32 %v120, %v146
    %v151 = vsub.f32 %v125, %v147
    %v152 = vsub.f32 %v128, %v148
    %v153 = vmul.f32 %v149, %v149
    %v154 = vmul.f32 %v150, %v150
    %v155 = vmul.f32 %v151, %v151
    %v156 = vmul.f32 %v152, %v152
    %v157 = vsel %vm131, %v153, 0.0
    %158 = vadd.xlane.f32.xlu0 %v157
    %v159 = vpop.xlane.xlu0 %158
    %v160 = vsel %vm131, %v154, 0.0
    %161 = vadd.xlane.f32.xlu0 %v160
    %v162 = vpop.xlane.xlu0 %161
    %v163 = vsel %vm131, %v155, 0.0
    %164 = vadd.xlane.f32.xlu0 %v163
    %v165 = vpop.xlane.xlu0 %164
    %v166 = vsel %vm131, %v156, 0.0
    %167 = vadd.xlane.f32.xlu0 %v166
    %v168 = vpop.xlane.xlu0 %167
    %v169 = vmul.f32 %v159, %v144
    %v170 = vmul.f32 %v162, %v144
    %v171 = vmul.f32 %v165, %v144
    %v172 = vmul.f32 %v168, %v144
    %v173 = vadd.f32 %v169, 1e-05
    %v174 = vadd.f32 %v170, 1e-05
    %v175 = vadd.f32 %v171, 1e-05
    %v176 = vadd.f32 %v172, 1e-05
    %v177 = vrsqrt.pop %v173
    %v178 = vrsqrt.pop %v174
    %v179 = vrsqrt.pop %v175
    %v180 = vrsqrt.pop %v176
    %v181 = vmul.f32 %v149, %v177
    %v182 = vmul.f32 %v150, %v178
    %v183 = vmul.f32 %v151, %v179
    %v184 = vmul.f32 %v152, %v180
    %v185 = vld [vmem:[%s3] sm:$0x1]
    %v187 = vlaneseq
    %v188 = vshrl.u32 %v187, 7
    %v189 = vsub.s32 0, %v188
    %v190 = vrot.slane %v185, %v189
    %v192 = vmul.f32 %v181, %v190
    %v193 = vmul.f32 %v182, %v190
    %v194 = vmul.f32 %v183, %v190
    %v195 = vmul.f32 %v184, %v190
    %v196 = vld [vmem:[%s4] sm:$0x1]
    %v198 = vlaneseq
    %v199 = vshrl.u32 %v198, 7
    %v200 = vsub.s32 0, %v199
    %v201 = vrot.slane %v196, %v200
    %v203 = vadd.f32 %v192, %v201
    %v204 = vadd.f32 %v193, %v201
    %v205 = vadd.f32 %v194, %v201
    %v206 = vadd.f32 %v195, %v201
    %207 = vst.msk [vmem:[#allocation2] sm:$0xff] %vm131, %v203
    %208 = vst.msk [vmem:[#allocation2 + $0x8] sm:$0xff] %vm131, %v204
    %209 = vst.msk [vmem:[#allocation2 + $0x10] sm:$0xff] %vm131, %v205
    %210 = vst.msk [vmem:[#allocation2 + $0x18] sm:$0xff] %vm131, %v206
    // Predicated region
    $region22: #{patchlize_forward.1} parent=1 // pred_check
      _
    $region23: #{patchlize_forward.1} parent=1 // pred_check_branch
      %212 = sbr.rel (0) target = $region25
    $region24: #{patchlize_forward.1} parent=1 // pred_region
      %s214 = ssub.s32 512, 512
      %215 = vsyncadd [#allocation3], %s214
      %s216 = sshll.u32 [#allocation2], 4
      %s217 = int_to_ptr.vmem [resolvable:$true] %s216
      %222 = dma.vmem_to_hbm [thread:$0]  %s217, 512, %s5, [#allocation3], 128, 128, 8
    $region25: #{patchlize_forward.1} parent=1 // pred_fallthru
      _
    // Predicated region
    $region26: #{patchlize_forward.1} parent=1 // pred_check
      _
    $region27: #{patchlize_forward.1} parent=1 // pred_check_branch
      %224 = sbr.rel (0) target = $region29
    $region28: #{patchlize_forward.1} parent=1 // pred_region
      %225 = dma.done [#allocation3], 512
    $region29: #{patchlize_forward.1} parent=1 // pred_fallthru
      _
    %226 = vsyncpa [#allocation3], 1

</llo_original>
